<compile_context>
chip_gen: v7x
topology: tpu7x:2x2x1
jax: 0.10.0
libtpu: 0.0.40
codegen_flags: <defaults>
</compile_context>

<pallas_src>
import math

import jax
import jax.numpy as jnp
from jax.experimental import pallas as pl
from jax.experimental.pallas import tpu as pltpu

NEG_SLOPE = 0.01  # F.leaky_relu default negative_slope


def _leaky_relu(x):
    return jnp.where(x > 0, x, NEG_SLOPE * x)


def _round_up(x, m):
    return (x + m - 1) // m * m


def head_kernel(img_ref, txt_ref,
                wr_ref, br_ref,    # fc_resnet : (VIS, H) bf16, (1, H) f32
                wt_ref, bt_ref,    # fc_roberta: (TXT, H) bf16, (1, H) f32
                wdt_ref, wdi_ref,  # classifier diff weight rows: (1, H) f32
                bd_ref,            # classifier diff bias       : (1, 1) f32
                out_ref):          # (TB, 2) f32 softmax probabilities
    # In-kernel cast to bf16 (MXU operands); HBM only ever sees the raw
    # activations once.  Accumulation + the whole epilogue stay f32 (v5e-safe).
    img = img_ref[...].astype(jnp.bfloat16)
    txt = txt_ref[...].astype(jnp.bfloat16)

    # image branch: F.leaky_relu(fc_resnet(resnet(image)))
    img_h = _leaky_relu(
        jnp.dot(img, wr_ref[...], preferred_element_type=jnp.float32)
        + br_ref[...])

    # text branch: F.leaky_relu(fc_roberta(cls_out))
    txt_h = _leaky_relu(
        jnp.dot(txt, wt_ref[...], preferred_element_type=jnp.float32)
        + bt_ref[...])

    # class_classifier on cat((text, image), 1), expressed WITHOUT a lane
    # concat and WITHOUT an MXU dot: for 2 classes
    #   softmax(logits) = [sigmoid(l0 - l1), sigmoid(l1 - l0)]
    # so only the difference logit d = l1 - l0 is needed; it is a VPU multiply
    # against the split difference-weight rows plus one lane reduce (XLU).
    d = (jnp.sum(txt_h * wdt_ref[...] + img_h * wdi_ref[...],
                 axis=-1, keepdims=True)
         + bd_ref[...])                                          # (TB, 1) f32

    # sigmoid(x) = 0.5*(1 + tanh(x/2)); tanh is odd -> one EUP pass, two lanes.
    t = jnp.tanh(0.5 * d)                                        # (TB, 1)
    out_ref[:, 0:1] = 0.5 - 0.5 * t                              # P(class 0)
    out_ref[:, 1:2] = 0.5 + 0.5 * t                              # P(class 1)


def prepare_params(wr, br, wt, bt, wc, bc):
    """Host-side parameter prep (done once, outside the kernel).

    - casts the two big fc weights to bf16 (MXU-native, f32 accumulation),
    - splits the (2H, 2) classifier weight into per-branch difference-logit
      ROWS (1, H): rows 0..H-1 of wc are the text branch, rows H..2H-1 the
      image branch, matching torch.cat((text, image), 1).
    Weights are expected stored (in, out); biases (1, out).
    """
    _, H = wr.shape
    wc_txt, wc_img = wc[:H, :], wc[H:, :]
    wdt = (wc_txt[:, 1] - wc_txt[:, 0]).reshape(1, H).astype(jnp.float32)
    wdi = (wc_img[:, 1] - wc_img[:, 0]).reshape(1, H).astype(jnp.float32)
    bd = (bc[:, 1:2] - bc[:, 0:1]).astype(jnp.float32)           # (1, 1)

    return dict(
        wr=wr.astype(jnp.bfloat16), br=br.astype(jnp.float32),
        wt=wt.astype(jnp.bfloat16), bt=bt.astype(jnp.float32),
        wdt=wdt, wdi=wdi, bd=bd,
    )


def multimodal_head(img_feat, txt_feat, params, *, tile_b=1024):
    """Fused wo_fusion head as a batch-gridded Pallas kernel.

    Feature tensors are consumed as-is (f32 or bf16); no host-side pad/cast
    pass.  tile_b is worth sweeping 1024-2048 on real batches.
    """
    B, vis_in = img_feat.shape
    _, txt_in = txt_feat.shape
    H = params["wr"].shape[1]

    # Minimal batch padding: only when B is not a sublane multiple (8).
    B_pad = _round_up(B, 8)
    if B_pad != B:
        img_feat = jnp.pad(img_feat, ((0, B_pad - B), (0, 0)))
        txt_feat = jnp.pad(txt_feat, ((0, B_pad - B), (0, 0)))

    # Batch tile: as large as possible to amortize per-step overhead, but
    # capped so the grid has >= 2 steps whenever the batch allows it (keeps
    # both v7x TensorCores busy under "parallel" semantics) and TB <= B_pad.
    TB = min(tile_b, B_pad, max(16, _round_up(pl.cdiv(B_pad, 2), 16)))
    TB = max(8, TB)
    grid = (pl.cdiv(B_pad, TB),)

    def act_spec(feat):
        return pl.BlockSpec((TB, feat), lambda i: (i, 0))

    def resident(shape):
        # constant index_map -> DMA'd once, stays VMEM-resident across steps
        return pl.BlockSpec(shape, lambda i: (0, 0))

    # VMEM budget: 2 activation inputs x 2 buffers x tile (+ output + weights),
    # with headroom; kept well under v7x's 64 MiB physical VMEM.
    act_itemsize = jnp.dtype(img_feat.dtype).itemsize
    vis_lanes = _round_up(vis_in, 128)
    txt_lanes = _round_up(txt_in, 128)
    vmem_bytes = 2 * TB * (vis_lanes + txt_lanes) * act_itemsize     # act blocks
    vmem_bytes += 2 * TB * 128 * 4                                   # out blocks
    vmem_bytes += 2 * (vis_in + txt_in) * 128 * 2                    # bf16 weights
    vmem_bytes += 8 * 1024 * 1024                                    # margin/scratch
    vmem_limit = int(min(vmem_bytes, 56 * 1024 * 1024))

    flops = 2 * B_pad * H * (vis_in + txt_in) + 4 * B_pad * H
    bytes_accessed = (
        B_pad * (vis_in + txt_in) * act_itemsize      # activations, read once
        + (vis_in + txt_in) * H * 2                   # bf16 fc weights
        + (4 * H + 1) * 4                             # f32 biases / diff rows
        + B_pad * 2 * 4                               # f32 output
    )
    cost = pl.CostEstimate(flops=int(flops),
                           transcendentals=int(B_pad),
                           bytes_accessed=int(bytes_accessed))

    out = pl.pallas_call(
        head_kernel,
        out_shape=jax.ShapeDtypeStruct((B_pad, 2), jnp.float32),
        grid=grid,
        in_specs=[
            act_spec(vis_in),                  # resnet features (raw dtype)
            act_spec(txt_in),                  # roberta cls features (raw dtype)
            resident((vis_in, H)),             # fc_resnet weight (bf16)
            resident((1, H)),                  # fc_resnet bias   (f32)
            resident((txt_in, H)),             # fc_roberta weight (bf16)
            resident((1, H)),                  # fc_roberta bias   (f32)
            resident((1, H)),                  # classifier diff row, text
            resident((1, H)),                  # classifier diff row, image
            resident((1, 1)),                  # classifier diff bias
        ],
        out_specs=pl.BlockSpec((TB, 2), lambda i: (i, 0)),
        compiler_params=pltpu.CompilerParams(
            dimension_semantics=("parallel",),   # v7x: shard batch across 2 TCs
            vmem_limit_bytes=vmem_limit),
        cost_estimate=cost,
    )(img_feat, txt_feat,
      params["wr"], params["br"],
      params["wt"], params["bt"],
      params["wdt"], params["wdi"], params["bd"])

    return out[:B]


def _init_linear(kw, kb, fan_in, fan_out):
    """PyTorch nn.Linear default init, weight stored as (in, out)."""
    bound = 1.0 / math.sqrt(fan_in)
    w = jax.random.uniform(kw, (fan_in, fan_out), jnp.float32, -bound, bound)
    b = jax.random.uniform(kb, (1, fan_out), jnp.float32, -bound, bound)
    return w, b


if __name__ == "__main__":
    HIDDEN = 32      # args.hidden_dim
    VIS_DIM = 1000   # resnet50.fc.out_features
    TXT_DIM = 768    # roberta hidden size
    B = 4

    key = jax.random.PRNGKey(0)
    keys = jax.random.split(key, 8)

    # TODO(synk): frozen pretrained backbones (resnet50, RoBERTa) and the
    # fusion modules (MULTModel, EmbraceNet — unused on the wo_fusion path)
    # are not translated; deterministic synthetic tensors stand in for
    # resnet(image) and roberta cls_out.
    img_feat = jax.random.normal(keys[0], (B, VIS_DIM), jnp.float32)
    txt_feat = jax.random.normal(keys[1], (B, TXT_DIM), jnp.float32)

    wr, br = _init_linear(keys[2], keys[3], VIS_DIM, HIDDEN)   # fc_resnet
    wt, bt = _init_linear(keys[4], keys[5], TXT_DIM, HIDDEN)   # fc_roberta
    wc, bc = _init_linear(keys[6], keys[7], 2 * HIDDEN, 2)     # c_fc1
    # NOTE: nn.Dropout(0.5) is defined in __init__ but never applied in forward.

    params = prepare_params(wr, br, wt, bt, wc, bc)

    out = jax.jit(multimodal_head)(img_feat, txt_feat, params)
    jax.block_until_ready(out)

    # Pure-JAX f32 reference (exact PyTorch forward semantics).
    def ref(img, txt):
        ih = _leaky_relu(img @ wr + br)
        th = _leaky_relu(txt @ wt + bt)
        feats = jnp.concatenate([th, ih], axis=1)   # torch.cat((text, image), 1)
        logits = feats @ wc + bc
        return jax.nn.softmax(logits, axis=1)

    expected = ref(img_feat, txt_feat)
    assert out.shape == (B, 2)
    # tolerance loosened for bf16 matmul operands (f32 accumulation)
    assert jnp.allclose(out, expected, atol=2e-2, rtol=2e-2)
    assert jnp.allclose(jnp.sum(out, axis=1), 1.0, atol=1e-5)

    print("KERNEL_OK")
</pallas_src>

<mosaic_0001>
module attributes {stable_mosaic.version = 11 : i64} {
  func.func @head_kernel(%arg0: i32, %arg1: memref<8x1000xf32, #tpu.memory_space<vmem>>, %arg2: memref<8x768xf32, #tpu.memory_space<vmem>>, %arg3: memref<1000x32xbf16, #tpu.memory_space<vmem>>, %arg4: memref<1x32xf32, #tpu.memory_space<vmem>>, %arg5: memref<768x32xbf16, #tpu.memory_space<vmem>>, %arg6: memref<1x32xf32, #tpu.memory_space<vmem>>, %arg7: memref<1x32xf32, #tpu.memory_space<vmem>>, %arg8: memref<1x32xf32, #tpu.memory_space<vmem>>, %arg9: memref<1x1xf32, #tpu.memory_space<vmem>>, %arg10: memref<8x2xf32, #tpu.memory_space<vmem>>) attributes {dimension_semantics = [#tpu.dimension_semantics<parallel>], iteration_bounds = array<i64: 1>, scalar_prefetch = 0 : i64, scratch_operands = 0 : i64, tpu.core_type = #tpu.core_type<tc>, window_params = [{transform_indices = @transform_0, window_bounds = array<i64: 8, 1000>}, {transform_indices = @transform_1, window_bounds = array<i64: 8, 768>}, {pipeline_mode = #tpu.pipeline_mode<synchronous>, transform_indices = @transform_2, window_bounds = array<i64: 1000, 32>}, {pipeline_mode = #tpu.pipeline_mode<synchronous>, transform_indices = @transform_3, window_bounds = array<i64: 1, 32>}, {pipeline_mode = #tpu.pipeline_mode<synchronous>, transform_indices = @transform_4, window_bounds = array<i64: 768, 32>}, {pipeline_mode = #tpu.pipeline_mode<synchronous>, transform_indices = @transform_5, window_bounds = array<i64: 1, 32>}, {pipeline_mode = #tpu.pipeline_mode<synchronous>, transform_indices = @transform_6, window_bounds = array<i64: 1, 32>}, {pipeline_mode = #tpu.pipeline_mode<synchronous>, transform_indices = @transform_7, window_bounds = array<i64: 1, 32>}, {pipeline_mode = #tpu.pipeline_mode<synchronous>, transform_indices = @transform_8, window_bounds = array<i64: 1, 1>}, {transform_indices = @transform_9, window_bounds = array<i64: 8, 2>}]} {
    %c0 = arith.constant 0 : index
    %c0_0 = arith.constant 0 : index
    %0 = vector.load %arg1[%c0, %c0_0] : memref<8x1000xf32, #tpu.memory_space<vmem>>, vector<8x1000xf32>
    %1 = arith.truncf %0 : vector<8x1000xf32> to vector<8x1000xbf16>
    %c0_1 = arith.constant 0 : index
    %c0_2 = arith.constant 0 : index
    %2 = vector.load %arg2[%c0_1, %c0_2] : memref<8x768xf32, #tpu.memory_space<vmem>>, vector<8x768xf32>
    %3 = arith.truncf %2 : vector<8x768xf32> to vector<8x768xbf16>
    %c0_3 = arith.constant 0 : index
    %c0_4 = arith.constant 0 : index
    %4 = vector.load %arg3[%c0_3, %c0_4] : memref<1000x32xbf16, #tpu.memory_space<vmem>>, vector<1000x32xbf16>
    %cst = arith.constant dense<0.000000e+00> : vector<8x32xf32>
    %5 = tpu.matmul %1, %4, %cst {dimension_numbers = #tpu.dot_dimension_numbers<[1], [0], [0], [1], [0, 0, 1, 1], [], []>} : vector<8x1000xbf16>, vector<1000x32xbf16>, vector<8x32xf32> -> vector<8x32xf32>
    %c0_5 = arith.constant 0 : index
    %c0_6 = arith.constant 0 : index
    %6 = vector.load %arg4[%c0_5, %c0_6] : memref<1x32xf32, #tpu.memory_space<vmem>>, vector<1x32xf32>
    %7 = vector.broadcast %6 : vector<1x32xf32> to vector<8x32xf32>
    %8 = arith.addf %5, %7 : vector<8x32xf32>
    %cst_7 = arith.constant 0.000000e+00 : f32
    %9 = vector.broadcast %cst_7 : f32 to vector<8x32xf32>
    %10 = arith.cmpf ogt, %8, %9 : vector<8x32xf32>
    %cst_8 = arith.constant 0.00999999977 : f32
    %11 = vector.broadcast %cst_8 : f32 to vector<8x32xf32>
    %12 = arith.mulf %11, %8 : vector<8x32xf32>
    %13 = arith.select %10, %8, %12 : vector<8x32xi1>, vector<8x32xf32>
    %c0_9 = arith.constant 0 : index
    %c0_10 = arith.constant 0 : index
    %14 = vector.load %arg5[%c0_9, %c0_10] : memref<768x32xbf16, #tpu.memory_space<vmem>>, vector<768x32xbf16>
    %cst_11 = arith.constant dense<0.000000e+00> : vector<8x32xf32>
    %15 = tpu.matmul %3, %14, %cst_11 {dimension_numbers = #tpu.dot_dimension_numbers<[1], [0], [0], [1], [0, 0, 1, 1], [], []>} : vector<8x768xbf16>, vector<768x32xbf16>, vector<8x32xf32> -> vector<8x32xf32>
    %c0_12 = arith.constant 0 : index
    %c0_13 = arith.constant 0 : index
    %16 = vector.load %arg6[%c0_12, %c0_13] : memref<1x32xf32, #tpu.memory_space<vmem>>, vector<1x32xf32>
    %17 = vector.broadcast %16 : vector<1x32xf32> to vector<8x32xf32>
    %18 = arith.addf %15, %17 : vector<8x32xf32>
    %cst_14 = arith.constant 0.000000e+00 : f32
    %19 = vector.broadcast %cst_14 : f32 to vector<8x32xf32>
    %20 = arith.cmpf ogt, %18, %19 : vector<8x32xf32>
    %cst_15 = arith.constant 0.00999999977 : f32
    %21 = vector.broadcast %cst_15 : f32 to vector<8x32xf32>
    %22 = arith.mulf %21, %18 : vector<8x32xf32>
    %23 = arith.select %20, %18, %22 : vector<8x32xi1>, vector<8x32xf32>
    %c0_16 = arith.constant 0 : index
    %c0_17 = arith.constant 0 : index
    %24 = vector.load %arg7[%c0_16, %c0_17] : memref<1x32xf32, #tpu.memory_space<vmem>>, vector<1x32xf32>
    %25 = vector.broadcast %24 : vector<1x32xf32> to vector<8x32xf32>
    %26 = arith.mulf %23, %25 : vector<8x32xf32>
    %c0_18 = arith.constant 0 : index
    %c0_19 = arith.constant 0 : index
    %27 = vector.load %arg8[%c0_18, %c0_19] : memref<1x32xf32, #tpu.memory_space<vmem>>, vector<1x32xf32>
    %28 = vector.broadcast %27 : vector<1x32xf32> to vector<8x32xf32>
    %29 = arith.mulf %13, %28 : vector<8x32xf32>
    %30 = arith.addf %26, %29 : vector<8x32xf32>
    %cst_20 = arith.constant dense<0.000000e+00> : vector<8xf32>
    %31 = vector.multi_reduction <add>, %30, %cst_20 [1] : vector<8x32xf32> to vector<8xf32>
    %32 = vector.shape_cast %31 : vector<8xf32> to vector<8x1xf32>
    %c0_21 = arith.constant 0 : index
    %c0_22 = arith.constant 0 : index
    %33 = vector.load %arg9[%c0_21, %c0_22] : memref<1x1xf32, #tpu.memory_space<vmem>>, vector<1x1xf32>
    %34 = vector.broadcast %33 : vector<1x1xf32> to vector<8x1xf32>
    %35 = arith.addf %32, %34 : vector<8x1xf32>
    %cst_23 = arith.constant 5.000000e-01 : f32
    %36 = vector.broadcast %cst_23 : f32 to vector<8x1xf32>
    %37 = arith.mulf %36, %35 : vector<8x1xf32>
    %38 = math.tanh %37 : vector<8x1xf32>
    %cst_24 = arith.constant 5.000000e-01 : f32
    %39 = vector.broadcast %cst_24 : f32 to vector<8x1xf32>
    %40 = arith.mulf %39, %38 : vector<8x1xf32>
    %cst_25 = arith.constant 5.000000e-01 : f32
    %41 = vector.broadcast %cst_25 : f32 to vector<8x1xf32>
    %42 = arith.subf %41, %40 : vector<8x1xf32>
    %c0_26 = arith.constant 0 : index
    %c0_27 = arith.constant 0 : index
    %43 = vector.load %arg10[%c0_26, %c0_27] : memref<8x2xf32, #tpu.memory_space<vmem>>, vector<8x1xf32>
    tpu.vector_store %arg10[%c0_26, %c0_27], %42 {strides = array<i32>} : memref<8x2xf32, #tpu.memory_space<vmem>>, vector<8x1xf32>,
    %cst_28 = arith.constant 5.000000e-01 : f32
    %44 = vector.broadcast %cst_28 : f32 to vector<8x1xf32>
    %45 = arith.mulf %44, %38 : vector<8x1xf32>
    %cst_29 = arith.constant 5.000000e-01 : f32
    %46 = vector.broadcast %cst_29 : f32 to vector<8x1xf32>
    %47 = arith.addf %46, %45 : vector<8x1xf32>
    %c0_30 = arith.constant 0 : index
    %c1 = arith.constant 1 : index
    %48 = vector.load %arg10[%c0_30, %c1] : memref<8x2xf32, #tpu.memory_space<vmem>>, vector<8x1xf32>
    tpu.vector_store %arg10[%c0_30, %c1], %47 {strides = array<i32>} : memref<8x2xf32, #tpu.memory_space<vmem>>, vector<8x1xf32>,
    return
  }
  func.func @transform_0(%arg0: i32) -> (i32, i32) {
    %c0_i32 = arith.constant 0 : i32
    %c0_i32_0 = arith.constant 0 : i32
    return %arg0, %c0_i32 : i32, i32
  }
  func.func @transform_1(%arg0: i32) -> (i32, i32) {
    %c0_i32 = arith.constant 0 : i32
    %c0_i32_0 = arith.constant 0 : i32
    return %arg0, %c0_i32 : i32, i32
  }
  func.func @transform_2(%arg0: i32) -> (i32, i32) {
    %c0_i32 = arith.constant 0 : i32
    %c0_i32_0 = arith.constant 0 : i32
    %c0_i32_1 = arith.constant 0 : i32
    return %c0_i32, %c0_i32_0 : i32, i32
  }
  func.func @transform_3(%arg0: i32) -> (i32, i32) {
    %c0_i32 = arith.constant 0 : i32
    %c0_i32_0 = arith.constant 0 : i32
    %c0_i32_1 = arith.constant 0 : i32
    return %c0_i32, %c0_i32_0 : i32, i32
  }
  func.func @transform_4(%arg0: i32) -> (i32, i32) {
    %c0_i32 = arith.constant 0 : i32
    %c0_i32_0 = arith.constant 0 : i32
    %c0_i32_1 = arith.constant 0 : i32
    return %c0_i32, %c0_i32_0 : i32, i32
  }
  func.func @transform_5(%arg0: i32) -> (i32, i32) {
    %c0_i32 = arith.constant 0 : i32
    %c0_i32_0 = arith.constant 0 : i32
    %c0_i32_1 = arith.constant 0 : i32
    return %c0_i32, %c0_i32_0 : i32, i32
  }
  func.func @transform_6(%arg0: i32) -> (i32, i32) {
    %c0_i32 = arith.constant 0 : i32
    %c0_i32_0 = arith.constant 0 : i32
    %c0_i32_1 = arith.constant 0 : i32
    return %c0_i32, %c0_i32_0 : i32, i32
  }
  func.func @transform_7(%arg0: i32) -> (i32, i32) {
    %c0_i32 = arith.constant 0 : i32
    %c0_i32_0 = arith.constant 0 : i32
    %c0_i32_1 = arith.constant 0 : i32
    return %c0_i32, %c0_i32_0 : i32, i32
  }
  func.func @transform_8(%arg0: i32) -> (i32, i32) {
    %c0_i32 = arith.constant 0 : i32
    %c0_i32_0 = arith.constant 0 : i32
    %c0_i32_1 = arith.constant 0 : i32
    return %c0_i32, %c0_i32_0 : i32, i32
  }
  func.func @transform_9(%arg0: i32) -> (i32, i32) {
    %c0_i32 = arith.constant 0 : i32
    %c0_i32_0 = arith.constant 0 : i32
    return %arg0, %c0_i32 : i32, i32
  }
}

</mosaic_0001>

<llo_original>
// kernel: multimodal_head.1
$region0: #{multimodal_head.1}
  #allocation0 [shape = 'u32[]', space=smem, size = 0x4, offset = 0x4, fixed_abs, tag = 'smem constant byte address 0x4 - core index']
  #allocation1 [shape = 'u32[144,128]{1,0:T(1,128)}', space=vmem, size = 0x12000, scoped, tag = 'internal scratch']
  #allocation2 [shape = 'f32[1,1]{1,0:T(1,128)S(1)}', space=vmem, size = 0x200, scoped, tag = 'scoped memory for multimodal_head.1']
  %s0 = inlined_call_operand.vmem [shape: f32[8,1000], index: 0, kind: input, shape index: {}]
  %s1 = inlined_call_operand.vmem [shape: f32[8,768], index: 1, kind: input, shape index: {}]
  %s2 = inlined_call_operand.vmem [shape: bf16[1000,32], index: 2, kind: input, shape index: {}]
  %s3 = inlined_call_operand.vmem [shape: f32[1,32], index: 3, kind: input, shape index: {}]
  %s4 = inlined_call_operand.vmem [shape: bf16[768,32], index: 4, kind: input, shape index: {}]
  %s5 = inlined_call_operand.vmem [shape: f32[1,32], index: 5, kind: input, shape index: {}]
  %s6 = inlined_call_operand.vmem [shape: f32[1,32], index: 6, kind: input, shape index: {}]
  %s7 = inlined_call_operand.vmem [shape: f32[1,32], index: 7, kind: input, shape index: {}]
  %s8 = inlined_call_operand.<no memory space> [shape: f32[1,1], index: 8, kind: input, shape index: {}]
  %s9 = inlined_call_operand.vmem [shape: f32[8,2], index: 9, kind: output, shape index: {}]
  %s10 = sld [smem:[#allocation0]]
  $region46: #{multimodal_head.1} parent=0
    _
  %s12 = ssub.s32 1, %s10
  %s13 = scalar_select 0, %s12, %s10
  %v14 = vstv %s8
  %15 = vst [vmem:[#allocation2] sm:$0x1] %v14
  // Predicated region
  $region2: #{multimodal_head.1} parent=0 // pred_check
    _
  $region3: #{multimodal_head.1} parent=0 // pred_check_branch
    %17 = sbr.rel (0) target = $region5
  $region4: #{multimodal_head.1} parent=0 // pred_region
    _
  $region5: #{multimodal_head.1} parent=0 // pred_fallthru
    _
  // Predicated region
  $region6: #{multimodal_head.1} parent=0 // pred_check
    _
  $region7: #{multimodal_head.1} parent=0 // pred_check_branch
    %19 = sbr.rel (0) target = $region9
  $region8: #{multimodal_head.1} parent=0 // pred_region
    _
  $region9: #{multimodal_head.1} parent=0 // pred_fallthru
    _
  // Predicated region
  $region10: #{multimodal_head.1} parent=0 // pred_check
    _
  $region11: #{multimodal_head.1} parent=0 // pred_check_branch
    %21 = sbr.rel (0) target = $region13
  $region12: #{multimodal_head.1} parent=0 // pred_region
    _
  $region13: #{multimodal_head.1} parent=0 // pred_fallthru
    _
  // Predicated region
  $region14: #{multimodal_head.1} parent=0 // pred_check
    _
  $region15: #{multimodal_head.1} parent=0 // pred_check_branch
    %23 = sbr.rel (0) target = $region17
  $region16: #{multimodal_head.1} parent=0 // pred_region
    _
  $region17: #{multimodal_head.1} parent=0 // pred_fallthru
    _
  // Predicated region
  $region18: #{multimodal_head.1} parent=0 // pred_check
    _
  $region19: #{multimodal_head.1} parent=0 // pred_check_branch
    %25 = sbr.rel (0) target = $region21
  $region20: #{multimodal_head.1} parent=0 // pred_region
    _
  $region21: #{multimodal_head.1} parent=0 // pred_fallthru
    _
  // Predicated region
  $region22: #{multimodal_head.1} parent=0 // pred_check
    _
  $region23: #{multimodal_head.1} parent=0 // pred_check_branch
    %27 = sbr.rel (0) target = $region25
  $region24: #{multimodal_head.1} parent=0 // pred_region
    _
  $region25: #{multimodal_head.1} parent=0 // pred_fallthru
    _
  // Predicated region
  $region26: #{multimodal_head.1} parent=0 // pred_check
    _
  $region27: #{multimodal_head.1} parent=0 // pred_check_branch
    %29 = sbr.rel (0) target = $region29
  $region28: #{multimodal_head.1} parent=0 // pred_region
    _
  $region29: #{multimodal_head.1} parent=0 // pred_fallthru
    _
  // Predicated region
  $region30: #{multimodal_head.1} parent=0 // pred_check
    _
  $region31: #{multimodal_head.1} parent=0 // pred_check_branch
    %31 = sbr.rel (0) target = $region33
  $region32: #{multimodal_head.1} parent=0 // pred_region
    _
  $region33: #{multimodal_head.1} parent=0 // pred_fallthru
    _
  // Predicated region
  $region34: #{multimodal_head.1} parent=0 // pred_check
    _
  $region35: #{multimodal_head.1} parent=0 // pred_check_branch
    %33 = sbr.rel (0) target = $region37
  $region36: #{multimodal_head.1} parent=0 // pred_region
    _
  $region37: #{multimodal_head.1} parent=0 // pred_fallthru
    _
  %v35 = vld [vmem:[%s0] sm:$0xff]
  %v36 = vld [vmem:[%s0 + $0x8] sm:$0xff]
  %v37 = vld [vmem:[%s0 + $0x10] sm:$0xff]
  %v38 = vld [vmem:[%s0 + $0x18] sm:$0xff]
  %v39 = vld [vmem:[%s0 + $0x20] sm:$0xff]
  %v40 = vld [vmem:[%s0 + $0x28] sm:$0xff]
  %v41 = vld [vmem:[%s0 + $0x30] sm:$0xff]
  %v42 = vld [vmem:[%s0 + $0x38] sm:$0xff]
  %v43 = vpack.c.bf16 %v35, %v35
  %v44 = vpack.c.bf16 %v36, %v36
  %v45 = vpack.c.bf16 %v37, %v37
  %v46 = vpack.c.bf16 %v38, %v38
  %v47 = vpack.c.bf16 %v39, %v39
  %v48 = vpack.c.bf16 %v40, %v40
  %v49 = vpack.c.bf16 %v41, %v41
  %v50 = vpack.c.bf16 %v42, %v42
  %v51 = vld [vmem:[%s1] sm:$0xff]
  %v52 = vld [vmem:[%s1 + $0x8] sm:$0xff]
  %v53 = vld [vmem:[%s1 + $0x10] sm:$0xff]
  %v54 = vld [vmem:[%s1 + $0x18] sm:$0xff]
  %v55 = vld [vmem:[%s1 + $0x20] sm:$0xff]
  %v56 = vld [vmem:[%s1 + $0x28] sm:$0xff]
  %v57 = vpack.c.bf16 %v51, %v51
  %v58 = vpack.c.bf16 %v52, %v52
  %v59 = vpack.c.bf16 %v53, %v53
  %v60 = vpack.c.bf16 %v54, %v54
  %v61 = vpack.c.bf16 %v55, %v55
  %v62 = vpack.c.bf16 %v56, %v56
  %v63 = vld [vmem:[%s2] sm:$0xf]
  %v64 = vld [vmem:[%s2 + $0x4] sm:$0xf]
  %v65 = vld [vmem:[%s2 + $0x8] sm:$0xf]
  %v66 = vld [vmem:[%s2 + $0xc] sm:$0xf]
  %v67 = vld [vmem:[%s2 + $0x10] sm:$0xf]
  %v68 = vld [vmem:[%s2 + $0x14] sm:$0xf]
  %v69 = vld [vmem:[%s2 + $0x18] sm:$0xf]
  %v70 = vld [vmem:[%s2 + $0x1c] sm:$0xf]
  %v71 = vld [vmem:[%s2 + $0x20] sm:$0xf]
  %v72 = vld [vmem:[%s2 + $0x24] sm:$0xf]
  %v73 = vld [vmem:[%s2 + $0x28] sm:$0xf]
  %v74 = vld [vmem:[%s2 + $0x2c] sm:$0xf]
  %v75 = vld [vmem:[%s2 + $0x30] sm:$0xf]
  %v76 = vld [vmem:[%s2 + $0x34] sm:$0xf]
  %v77 = vld [vmem:[%s2 + $0x38] sm:$0xf]
  %v78 = vld [vmem:[%s2 + $0x3c] sm:$0xf]
  %v79 = vld [vmem:[%s2 + $0x40] sm:$0xf]
  %v80 = vld [vmem:[%s2 + $0x44] sm:$0xf]
  %v81 = vld [vmem:[%s2 + $0x48] sm:$0xf]
  %v82 = vld [vmem:[%s2 + $0x4c] sm:$0xf]
  %v83 = vld [vmem:[%s2 + $0x50] sm:$0xf]
  %v84 = vld [vmem:[%s2 + $0x54] sm:$0xf]
  %v85 = vld [vmem:[%s2 + $0x58] sm:$0xf]
  %v86 = vld [vmem:[%s2 + $0x5c] sm:$0xf]
  %v87 = vld [vmem:[%s2 + $0x60] sm:$0xf]
  %v88 = vld [vmem:[%s2 + $0x64] sm:$0xf]
  %v89 = vld [vmem:[%s2 + $0x68] sm:$0xf]
  %v90 = vld [vmem:[%s2 + $0x6c] sm:$0xf]
  %v91 = vld [vmem:[%s2 + $0x70] sm:$0xf]
  %v92 = vld [vmem:[%s2 + $0x74] sm:$0xf]
  %v93 = vld [vmem:[%s2 + $0x78] sm:$0xf]
  %v94 = vld [vmem:[%s2 + $0x7c] sm:$0xf]
  %v95 = vld [vmem:[%s2 + $0x80] sm:$0xf]
  %v96 = vld [vmem:[%s2 + $0x84] sm:$0xf]
  %v97 = vld [vmem:[%s2 + $0x88] sm:$0xf]
  %v98 = vld [vmem:[%s2 + $0x8c] sm:$0xf]
  %v99 = vld [vmem:[%s2 + $0x90] sm:$0xf]
  %v100 = vld [vmem:[%s2 + $0x94] sm:$0xf]
  %v101 = vld [vmem:[%s2 + $0x98] sm:$0xf]
  %v102 = vld [vmem:[%s2 + $0x9c] sm:$0xf]
  %v103 = vld [vmem:[%s2 + $0xa0] sm:$0xf]
  %v104 = vld [vmem:[%s2 + $0xa4] sm:$0xf]
  %v105 = vld [vmem:[%s2 + $0xa8] sm:$0xf]
  %v106 = vld [vmem:[%s2 + $0xac] sm:$0xf]
  %v107 = vld [vmem:[%s2 + $0xb0] sm:$0xf]
  %v108 = vld [vmem:[%s2 + $0xb4] sm:$0xf]
  %v109 = vld [vmem:[%s2 + $0xb8] sm:$0xf]
  %v110 = vld [vmem:[%s2 + $0xbc] sm:$0xf]
  %v111 = vld [vmem:[%s2 + $0xc0] sm:$0xf]
  %v112 = vld [vmem:[%s2 + $0xc4] sm:$0xf]
  %v113 = vld [vmem:[%s2 + $0xc8] sm:$0xf]
  %v114 = vld [vmem:[%s2 + $0xcc] sm:$0xf]
  %v115 = vld [vmem:[%s2 + $0xd0] sm:$0xf]
  %v116 = vld [vmem:[%s2 + $0xd4] sm:$0xf]
  %v117 = vld [vmem:[%s2 + $0xd8] sm:$0xf]
  %v118 = vld [vmem:[%s2 + $0xdc] sm:$0xf]
  %v119 = vld [vmem:[%s2 + $0xe0] sm:$0xf]
  %v120 = vld [vmem:[%s2 + $0xe4] sm:$0xf]
  %v121 = vld [vmem:[%s2 + $0xe8] sm:$0xf]
  %v122 = vld [vmem:[%s2 + $0xec] sm:$0xf]
  %v123 = vld [vmem:[%s2 + $0xf0] sm:$0xf]
  %v124 = vld [vmem:[%s2 + $0xf4] sm:$0xf]
  %v125 = vld [vmem:[%s2 + $0xf8] sm:$0xf]
  %v126 = vld [vmem:[%s2 + $0xfc] sm:$0xf]
  %v127 = vld [vmem:[%s2 + $0x100] sm:$0xf]
  %v128 = vld [vmem:[%s2 + $0x104] sm:$0xf]
  %v129 = vld [vmem:[%s2 + $0x108] sm:$0xf]
  %v130 = vld [vmem:[%s2 + $0x10c] sm:$0xf]
  %v131 = vld [vmem:[%s2 + $0x110] sm:$0xf]
  %v132 = vld [vmem:[%s2 + $0x114] sm:$0xf]
  %v133 = vld [vmem:[%s2 + $0x118] sm:$0xf]
  %v134 = vld [vmem:[%s2 + $0x11c] sm:$0xf]
  %v135 = vld [vmem:[%s2 + $0x120] sm:$0xf]
  %v136 = vld [vmem:[%s2 + $0x124] sm:$0xf]
  %v137 = vld [vmem:[%s2 + $0x128] sm:$0xf]
  %v138 = vld [vmem:[%s2 + $0x12c] sm:$0xf]
  %v139 = vld [vmem:[%s2 + $0x130] sm:$0xf]
  %v140 = vld [vmem:[%s2 + $0x134] sm:$0xf]
  %v141 = vld [vmem:[%s2 + $0x138] sm:$0xf]
  %v142 = vld [vmem:[%s2 + $0x13c] sm:$0xf]
  %v143 = vld [vmem:[%s2 + $0x140] sm:$0xf]
  %v144 = vld [vmem:[%s2 + $0x144] sm:$0xf]
  %v145 = vld [vmem:[%s2 + $0x148] sm:$0xf]
  %v146 = vld [vmem:[%s2 + $0x14c] sm:$0xf]
  %v147 = vld [vmem:[%s2 + $0x150] sm:$0xf]
  %v148 = vld [vmem:[%s2 + $0x154] sm:$0xf]
  %v149 = vld [vmem:[%s2 + $0x158] sm:$0xf]
  %v150 = vld [vmem:[%s2 + $0x15c] sm:$0xf]
  %v151 = vld [vmem:[%s2 + $0x160] sm:$0xf]
  %v152 = vld [vmem:[%s2 + $0x164] sm:$0xf]
  %v153 = vld [vmem:[%s2 + $0x168] sm:$0xf]
  %v154 = vld [vmem:[%s2 + $0x16c] sm:$0xf]
  %v155 = vld [vmem:[%s2 + $0x170] sm:$0xf]
  %v156 = vld [vmem:[%s2 + $0x174] sm:$0xf]
  %v157 = vld [vmem:[%s2 + $0x178] sm:$0xf]
  %v158 = vld [vmem:[%s2 + $0x17c] sm:$0xf]
  %v159 = vld [vmem:[%s2 + $0x180] sm:$0xf]
  %v160 = vld [vmem:[%s2 + $0x184] sm:$0xf]
  %v161 = vld [vmem:[%s2 + $0x188] sm:$0xf]
  %v162 = vld [vmem:[%s2 + $0x18c] sm:$0xf]
  %v163 = vld [vmem:[%s2 + $0x190] sm:$0xf]
  %v164 = vld [vmem:[%s2 + $0x194] sm:$0xf]
  %v165 = vld [vmem:[%s2 + $0x198] sm:$0xf]
  %v166 = vld [vmem:[%s2 + $0x19c] sm:$0xf]
  %v167 = vld [vmem:[%s2 + $0x1a0] sm:$0xf]
  %v168 = vld [vmem:[%s2 + $0x1a4] sm:$0xf]
  %v169 = vld [vmem:[%s2 + $0x1a8] sm:$0xf]
  %v170 = vld [vmem:[%s2 + $0x1ac] sm:$0xf]
  %v171 = vld [vmem:[%s2 + $0x1b0] sm:$0xf]
  %v172 = vld [vmem:[%s2 + $0x1b4] sm:$0xf]
  %v173 = vld [vmem:[%s2 + $0x1b8] sm:$0xf]
  %v174 = vld [vmem:[%s2 + $0x1bc] sm:$0xf]
  %v175 = vld [vmem:[%s2 + $0x1c0] sm:$0xf]
  %v176 = vld [vmem:[%s2 + $0x1c4] sm:$0xf]
  %v177 = vld [vmem:[%s2 + $0x1c8] sm:$0xf]
  %v178 = vld [vmem:[%s2 + $0x1cc] sm:$0xf]
  %v179 = vld [vmem:[%s2 + $0x1d0] sm:$0xf]
  %v180 = vld [vmem:[%s2 + $0x1d4] sm:$0xf]
  %v181 = vld [vmem:[%s2 + $0x1d8] sm:$0xf]
  %v182 = vld [vmem:[%s2 + $0x1dc] sm:$0xf]
  %v183 = vld [vmem:[%s2 + $0x1e0] sm:$0xf]
  %v184 = vld [vmem:[%s2 + $0x1e4] sm:$0xf]
  %v185 = vld [vmem:[%s2 + $0x1e8] sm:$0xf]
  %v186 = vld [vmem:[%s2 + $0x1ec] sm:$0xf]
  %v187 = vld [vmem:[%s2 + $0x1f0] sm:$0xf]
  %v188 = vld [vmem:[%s3] sm:$0x1]
  %v190 = vlaneseq
  %v191 = vshrl.u32 %v190, 7
  %v192 = vsub.s32 0, %v191
  %v193 = vrot.slane %v188, %v192
  %v320 = vunpack.c.l.b16 %v63
  %v321 = vunpack.c.l.b16 %v64
  %v322 = vunpack.c.l.b16 %v65
  %v323 = vunpack.c.l.b16 %v66
  %v324 = vunpack.c.l.b16 %v67
  %v325 = vunpack.c.l.b16 %v68
  %v326 = vunpack.c.l.b16 %v69
  %v327 = vunpack.c.l.b16 %v70
  %v328 = vunpack.c.l.b16 %v71
  %v329 = vunpack.c.l.b16 %v72
  %v330 = vunpack.c.l.b16 %v73
  %v331 = vunpack.c.l.b16 %v74
  %v332 = vunpack.c.l.b16 %v75
  %v333 = vunpack.c.l.b16 %v76
  %v334 = vunpack.c.l.b16 %v77
  %v335 = vunpack.c.l.b16 %v78
  %v336 = vunpack.c.l.b16 %v79
  %v337 = vunpack.c.l.b16 %v80
  %v338 = vunpack.c.l.b16 %v81
  %v339 = vunpack.c.l.b16 %v82
  %v340 = vunpack.c.l.b16 %v83
  %v341 = vunpack.c.l.b16 %v84
  %v342 = vunpack.c.l.b16 %v85
  %v343 = vunpack.c.l.b16 %v86
  %v344 = vunpack.c.l.b16 %v87
  %v345 = vunpack.c.l.b16 %v88
  %v346 = vunpack.c.l.b16 %v89
  %v347 = vunpack.c.l.b16 %v90
  %v348 = vunpack.c.l.b16 %v91
  %v349 = vunpack.c.l.b16 %v92
  %v350 = vunpack.c.l.b16 %v93
  %v351 = vunpack.c.l.b16 %v94
  %v352 = vunpack.c.l.b16 %v95
  %v353 = vunpack.c.l.b16 %v96
  %v354 = vunpack.c.l.b16 %v97
  %v355 = vunpack.c.l.b16 %v98
  %v356 = vunpack.c.l.b16 %v99
  %v357 = vunpack.c.l.b16 %v100
  %v358 = vunpack.c.l.b16 %v101
  %v359 = vunpack.c.l.b16 %v102
  %v360 = vunpack.c.l.b16 %v103
  %v361 = vunpack.c.l.b16 %v104
  %v362 = vunpack.c.l.b16 %v105
  %v363 = vunpack.c.l.b16 %v106
  %v364 = vunpack.c.l.b16 %v107
  %v365 = vunpack.c.l.b16 %v108
  %v366 = vunpack.c.l.b16 %v109
  %v367 = vunpack.c.l.b16 %v110
  %v368 = vunpack.c.l.b16 %v111
  %v369 = vunpack.c.l.b16 %v112
  %v370 = vunpack.c.l.b16 %v113
  %v371 = vunpack.c.l.b16 %v114
  %v372 = vunpack.c.l.b16 %v115
  %v373 = vunpack.c.l.b16 %v116
  %v374 = vunpack.c.l.b16 %v117
  %v375 = vunpack.c.l.b16 %v118
  %v376 = vunpack.c.l.b16 %v119
  %v377 = vunpack.c.l.b16 %v120
  %v378 = vunpack.c.l.b16 %v121
  %v379 = vunpack.c.l.b16 %v122
  %v380 = vunpack.c.l.b16 %v123
  %v381 = vunpack.c.l.b16 %v124
  %v382 = vunpack.c.l.b16 %v125
  %v383 = vunpack.c.l.b16 %v126
  %v384 = vunpack.c.l.b16 %v127
  %v385 = vunpack.c.l.b16 %v128
  %v386 = vunpack.c.l.b16 %v129
  %v387 = vunpack.c.l.b16 %v130
  %v388 = vunpack.c.l.b16 %v131
  %v389 = vunpack.c.l.b16 %v132
  %v390 = vunpack.c.l.b16 %v133
  %v391 = vunpack.c.l.b16 %v134
  %v392 = vunpack.c.l.b16 %v135
  %v393 = vunpack.c.l.b16 %v136
  %v394 = vunpack.c.l.b16 %v137
  %v395 = vunpack.c.l.b16 %v138
  %v396 = vunpack.c.l.b16 %v139
  %v397 = vunpack.c.l.b16 %v140
  %v398 = vunpack.c.l.b16 %v141
  %v399 = vunpack.c.l.b16 %v142
  %v400 = vunpack.c.l.b16 %v143
  %v401 = vunpack.c.l.b16 %v144
  %v402 = vunpack.c.l.b16 %v145
  %v403 = vunpack.c.l.b16 %v146
  %v404 = vunpack.c.l.b16 %v147
  %v405 = vunpack.c.l.b16 %v148
  %v406 = vunpack.c.l.b16 %v149
  %v407 = vunpack.c.l.b16 %v150
  %v408 = vunpack.c.l.b16 %v151
  %v409 = vunpack.c.l.b16 %v152
  %v410 = vunpack.c.l.b16 %v153
  %v411 = vunpack.c.l.b16 %v154
  %v412 = vunpack.c.l.b16 %v155
  %v413 = vunpack.c.l.b16 %v156
  %v414 = vunpack.c.l.b16 %v157
  %v415 = vunpack.c.l.b16 %v158
  %v416 = vunpack.c.l.b16 %v159
  %v417 = vunpack.c.l.b16 %v160
  %v418 = vunpack.c.l.b16 %v161
  %v419 = vunpack.c.l.b16 %v162
  %v420 = vunpack.c.l.b16 %v163
  %v421 = vunpack.c.l.b16 %v164
  %v422 = vunpack.c.l.b16 %v165
  %v423 = vunpack.c.l.b16 %v166
  %v424 = vunpack.c.l.b16 %v167
  %v425 = vunpack.c.l.b16 %v168
  %v426 = vunpack.c.l.b16 %v169
  %v427 = vunpack.c.l.b16 %v170
  %v428 = vunpack.c.l.b16 %v171
  %v429 = vunpack.c.l.b16 %v172
  %v430 = vunpack.c.l.b16 %v173
  %v431 = vunpack.c.l.b16 %v174
  %v432 = vunpack.c.l.b16 %v175
  %v433 = vunpack.c.l.b16 %v176
  %v434 = vunpack.c.l.b16 %v177
  %v435 = vunpack.c.l.b16 %v178
  %v436 = vunpack.c.l.b16 %v179
  %v437 = vunpack.c.l.b16 %v180
  %v438 = vunpack.c.l.b16 %v181
  %v439 = vunpack.c.l.b16 %v182
  %v440 = vunpack.c.l.b16 %v183
  %v441 = vunpack.c.l.b16 %v184
  %v442 = vunpack.c.l.b16 %v185
  %v443 = vunpack.c.l.b16 %v186
  %v444 = vunpack.c.l.b16 %v187
  %v445 = vpack.c.b16 %v321, %v320
  %v446 = vpack.c.b16 %v323, %v322
  %v447 = vpack.c.b16 %v325, %v324
  %v448 = vpack.c.b16 %v327, %v326
  %v449 = vpack.c.b16 %v329, %v328
  %v450 = vpack.c.b16 %v331, %v330
  %v451 = vpack.c.b16 %v333, %v332
  %v452 = vpack.c.b16 %v335, %v334
  %v453 = vpack.c.b16 %v337, %v336
  %v454 = vpack.c.b16 %v339, %v338
  %v455 = vpack.c.b16 %v341, %v340
  %v456 = vpack.c.b16 %v343, %v342
  %v457 = vpack.c.b16 %v345, %v344
  %v458 = vpack.c.b16 %v347, %v346
  %v459 = vpack.c.b16 %v349, %v348
  %v460 = vpack.c.b16 %v351, %v350
  %v461 = vpack.c.b16 %v353, %v352
  %v462 = vpack.c.b16 %v355, %v354
  %v463 = vpack.c.b16 %v357, %v356
  %v464 = vpack.c.b16 %v359, %v358
  %v465 = vpack.c.b16 %v361, %v360
  %v466 = vpack.c.b16 %v363, %v362
  %v467 = vpack.c.b16 %v365, %v364
  %v468 = vpack.c.b16 %v367, %v366
  %v469 = vpack.c.b16 %v369, %v368
  %v470 = vpack.c.b16 %v371, %v370
  %v471 = vpack.c.b16 %v373, %v372
  %v472 = vpack.c.b16 %v375, %v374
  %v473 = vpack.c.b16 %v377, %v376
  %v474 = vpack.c.b16 %v379, %v378
  %v475 = vpack.c.b16 %v381, %v380
  %v476 = vpack.c.b16 %v383, %v382
  %v477 = vpack.c.b16 %v385, %v384
  %v478 = vpack.c.b16 %v387, %v386
  %v479 = vpack.c.b16 %v389, %v388
  %v480 = vpack.c.b16 %v391, %v390
  %v481 = vpack.c.b16 %v393, %v392
  %v482 = vpack.c.b16 %v395, %v394
  %v483 = vpack.c.b16 %v397, %v396
  %v484 = vpack.c.b16 %v399, %v398
  %v485 = vpack.c.b16 %v401, %v400
  %v486 = vpack.c.b16 %v403, %v402
  %v487 = vpack.c.b16 %v405, %v404
  %v488 = vpack.c.b16 %v407, %v406
  %v489 = vpack.c.b16 %v409, %v408
  %v490 = vpack.c.b16 %v411, %v410
  %v491 = vpack.c.b16 %v413, %v412
  %v492 = vpack.c.b16 %v415, %v414
  %v493 = vpack.c.b16 %v417, %v416
  %v494 = vpack.c.b16 %v419, %v418
  %v495 = vpack.c.b16 %v421, %v420
  %v496 = vpack.c.b16 %v423, %v422
  %v497 = vpack.c.b16 %v425, %v424
  %v498 = vpack.c.b16 %v427, %v426
  %v499 = vpack.c.b16 %v429, %v428
  %v500 = vpack.c.b16 %v431, %v430
  %v501 = vpack.c.b16 %v433, %v432
  %v502 = vpack.c.b16 %v435, %v434
  %v503 = vpack.c.b16 %v437, %v436
  %v504 = vpack.c.b16 %v439, %v438
  %v505 = vpack.c.b16 %v441, %v440
  %v506 = vpack.c.b16 %v443, %v442
  %v507 = vpack.c.b16 %v444, %v444
  %vm570 = vcmask 850944
  %v572 = vsel %vm570, %v50, 0
  %vm574 = vcmask 1043456
  %v576 = vsel %vm574, %v507, 0
  %578 = vmatprep.subr.bf16.mxu0 0
  %579 = vmatpush1.bf16.msra.mxu0 %v445
  %580 = vmatprep.subr.bf16.mxu0 0
  %581 = vmatpush1.bf16.msra.mxu0 %v446
  %582 = vmatprep.subr.bf16.mxu0 0
  %583 = vmatpush1.bf16.msra.mxu0 %v447
  %584 = vmatprep.subr.bf16.mxu0 0
  %585 = vmatpush1.bf16.msra.mxu0 %v448
  %586 = vmatprep.subr.bf16.mxu0 0
  %587 = vmatpush1.bf16.msra.mxu0 %v449
  %588 = vmatprep.subr.bf16.mxu0 0
  %589 = vmatpush1.bf16.msra.mxu0 %v450
  %590 = vmatprep.subr.bf16.mxu0 0
  %591 = vmatpush1.bf16.msra.mxu0 %v451
  %592 = vmatprep.subr.bf16.mxu0 0
  %593 = vmatpush1.bf16.msra.mxu0 %v452
  %594 = vmatprep.subr.bf16.mxu0 0
  %595 = vmatpush1.bf16.msra.mxu0 %v453
  %596 = vmatprep.subr.bf16.mxu0 0
  %597 = vmatpush1.bf16.msra.mxu0 %v454
  %598 = vmatprep.subr.bf16.mxu0 0
  %599 = vmatpush1.bf16.msra.mxu0 %v455
  %600 = vmatprep.subr.bf16.mxu0 0
  %601 = vmatpush1.bf16.msra.mxu0 %v456
  %602 = vmatprep.subr.bf16.mxu0 0
  %603 = vmatpush1.bf16.msra.mxu0 %v457
  %604 = vmatprep.subr.bf16.mxu0 0
  %605 = vmatpush1.bf16.msra.mxu0 %v458
  %606 = vmatprep.subr.bf16.mxu0 0
  %607 = vmatpush1.bf16.msra.mxu0 %v459
  %608 = vmatprep.subr.bf16.mxu0 0
  %609 = vmatpush1.bf16.msra.mxu0 %v460
  %610 = vmatprep.mubr.bf16.mxu0 %v44
  %611 = vmatmul.mubr.bf16.gmra.mrb[0].mxu0 %v43
  %v612 = vpop.f32.mrb[0].mxu0
  %v613 = vadd.f32 %v193, %v612
  %v614 = vpop.f32.mrb[0].mxu0
  %v615 = vpop.f32.mrb[0].mxu0
  %v616 = vpop.f32.mrb[0].mxu0
  %617 = vdwg.mxu0
  %618 = vmatprep.subr.bf16.mxu0 0
  %619 = vmatpush1.bf16.msra.mxu0 %v461
  %620 = vmatprep.subr.bf16.mxu0 0
  %621 = vmatpush1.bf16.msra.mxu0 %v462
  %622 = vmatprep.subr.bf16.mxu0 0
  %623 = vmatpush1.bf16.msra.mxu0 %v463
  %624 = vmatprep.subr.bf16.mxu0 0
  %625 = vmatpush1.bf16.msra.mxu0 %v464
  %626 = vmatprep.subr.bf16.mxu0 0
  %627 = vmatpush1.bf16.msra.mxu0 %v465
  %628 = vmatprep.subr.bf16.mxu0 0
  %629 = vmatpush1.bf16.msra.mxu0 %v466
  %630 = vmatprep.subr.bf16.mxu0 0
  %631 = vmatpush1.bf16.msra.mxu0 %v467
  %632 = vmatprep.subr.bf16.mxu0 0
  %633 = vmatpush1.bf16.msra.mxu0 %v468
  %634 = vmatprep.subr.bf16.mxu0 0
  %635 = vmatpush1.bf16.msra.mxu0 %v469
  %636 = vmatprep.subr.bf16.mxu0 0
  %637 = vmatpush1.bf16.msra.mxu0 %v470
  %638 = vmatprep.subr.bf16.mxu0 0
  %639 = vmatpush1.bf16.msra.mxu0 %v471
  %640 = vmatprep.subr.bf16.mxu0 0
  %641 = vmatpush1.bf16.msra.mxu0 %v472
  %642 = vmatprep.subr.bf16.mxu0 0
  %643 = vmatpush1.bf16.msra.mxu0 %v473
  %644 = vmatprep.subr.bf16.mxu0 0
  %645 = vmatpush1.bf16.msra.mxu0 %v474
  %646 = vmatprep.subr.bf16.mxu0 0
  %647 = vmatpush1.bf16.msra.mxu0 %v475
  %648 = vmatprep.subr.bf16.mxu0 0
  %649 = vmatpush1.bf16.msra.mxu0 %v476
  %650 = vmatprep.mubr.bf16.mxu0 %v46
  %651 = vmatmul.mubr.bf16.gmra.mrb[0].mxu0 %v45
  %v652 = vpop.f32.mrb[0].mxu0
  %v653 = vadd.f32 %v613, %v652
  %v654 = vpop.f32.mrb[0].mxu0
  %v655 = vpop.f32.mrb[0].mxu0
  %v656 = vpop.f32.mrb[0].mxu0
  %657 = vdwg.mxu0
  %658 = vmatprep.subr.bf16.mxu0 0
  %659 = vmatpush1.bf16.msra.mxu0 %v477
  %660 = vmatprep.subr.bf16.mxu0 0
  %661 = vmatpush1.bf16.msra.mxu0 %v478
  %662 = vmatprep.subr.bf16.mxu0 0
  %663 = vmatpush1.bf16.msra.mxu0 %v479
  %664 = vmatprep.subr.bf16.mxu0 0
  %665 = vmatpush1.bf16.msra.mxu0 %v480
  %666 = vmatprep.subr.bf16.mxu0 0
  %667 = vmatpush1.bf16.msra.mxu0 %v481
  %668 = vmatprep.subr.bf16.mxu0 0
  %669 = vmatpush1.bf16.msra.mxu0 %v482
  %670 = vmatprep.subr.bf16.mxu0 0
  %671 = vmatpush1.bf16.msra.mxu0 %v483
  %672 = vmatprep.subr.bf16.mxu0 0
  %673 = vmatpush1.bf16.msra.mxu0 %v484
  %674 = vmatprep.subr.bf16.mxu0 0
  %675 = vmatpush1.bf16.msra.mxu0 %v485
  %676 = vmatprep.subr.bf16.mxu0 0
  %677 = vmatpush1.bf16.msra.mxu0 %v486
  %678 = vmatprep.subr.bf16.mxu0 0
  %679 = vmatpush1.bf16.msra.mxu0 %v487
  %680 = vmatprep.subr.bf16.mxu0 0
  %681 = vmatpush1.bf16.msra.mxu0 %v488
  %682 = vmatprep.subr.bf16.mxu0 0
  %683 = vmatpush1.bf16.msra.mxu0 %v489
  %684 = vmatprep.subr.bf16.mxu0 0
  %685 = vmatpush1.bf16.msra.mxu0 %v490
  %686 = vmatprep.subr.bf16.mxu0 0
  %687 = vmatpush1.bf16.msra.mxu0 %v491
  %688 = vmatprep.subr.bf16.mxu0 0
  %689 = vmatpush1.bf16.msra.mxu0 %v492
  %690 = vmatprep.mubr.bf16.mxu0 %v48
  %691 = vmatmul.mubr.bf16.gmra.mrb[0].mxu0 %v47
  %v692 = vpop.f32.mrb[0].mxu0
  %v693 = vadd.f32 %v653, %v692
  %v694 = vpop.f32.mrb[0].mxu0
  %v695 = vpop.f32.mrb[0].mxu0
  %v696 = vpop.f32.mrb[0].mxu0
  %697 = vdwg.mxu0
  %698 = vmatprep.subr.bf16.mxu0 0
  %699 = vmatpush1.bf16.msra.mxu0 %v493
  %700 = vmatprep.subr.bf16.mxu0 0
  %701 = vmatpush1.bf16.msra.mxu0 %v494
  %702 = vmatprep.subr.bf16.mxu0 0
  %703 = vmatpush1.bf16.msra.mxu0 %v495
  %704 = vmatprep.subr.bf16.mxu0 0
  %705 = vmatpush1.bf16.msra.mxu0 %v496
  %706 = vmatprep.subr.bf16.mxu0 0
  %707 = vmatpush1.bf16.msra.mxu0 %v497
  %708 = vmatprep.subr.bf16.mxu0 0
  %709 = vmatpush1.bf16.msra.mxu0 %v498
  %710 = vmatprep.subr.bf16.mxu0 0
  %711 = vmatpush1.bf16.msra.mxu0 %v499
  %712 = vmatprep.subr.bf16.mxu0 0
  %713 = vmatpush1.bf16.msra.mxu0 %v500
  %714 = vmatprep.subr.bf16.mxu0 0
  %715 = vmatpush1.bf16.msra.mxu0 %v501
  %716 = vmatprep.subr.bf16.mxu0 0
  %717 = vmatpush1.bf16.msra.mxu0 %v502
  %718 = vmatprep.subr.bf16.mxu0 0
  %719 = vmatpush1.bf16.msra.mxu0 %v503
  %720 = vmatprep.subr.bf16.mxu0 0
  %721 = vmatpush1.bf16.msra.mxu0 %v504
  %722 = vmatprep.subr.bf16.mxu0 0
  %723 = vmatpush1.bf16.msra.mxu0 %v505
  %724 = vmatprep.subr.bf16.mxu0 0
  %725 = vmatpush1.bf16.msra.mxu0 %v506
  %726 = vmatprep.subr.bf16.mxu0 0
  %727 = vmatpush1.bf16.msra.mxu0 %v576
  %728 = vmatprep.subr.bf16.mxu0 0
  %729 = vmatpush1.bf16.msra.mxu0 0
  %730 = vmatprep.mubr.bf16.mxu0 %v572
  %731 = vmatmul.mubr.bf16.gmra.mrb[0].mxu0 %v49
  %v732 = vpop.f32.mrb[0].mxu0
  %v733 = vadd.f32 %v693, %v732
  %v734 = vpop.f32.mrb[0].mxu0
  %v735 = vpop.f32.mrb[0].mxu0
  %v736 = vpop.f32.mrb[0].mxu0
  %737 = vdwg.mxu0
  %vm738 = vcmp.gt.f32.partialorder %v733, 0.0
  %v739 = vmul.f32 %v733, 0.01
  %v740 = vsel %vm738, %v733, %v739
  %v741 = vld [vmem:[%s4] sm:$0xf]
  %v742 = vld [vmem:[%s4 + $0x4] sm:$0xf]
  %v743 = vld [vmem:[%s4 + $0x8] sm:$0xf]
  %v744 = vld [vmem:[%s4 + $0xc] sm:$0xf]
  %v745 = vld [vmem:[%s4 + $0x10] sm:$0xf]
  %v746 = vld [vmem:[%s4 + $0x14] sm:$0xf]
  %v747 = vld [vmem:[%s4 + $0x18] sm:$0xf]
  %v748 = vld [vmem:[%s4 + $0x1c] sm:$0xf]
  %v749 = vld [vmem:[%s4 + $0x20] sm:$0xf]
  %v750 = vld [vmem:[%s4 + $0x24] sm:$0xf]
  %v751 = vld [vmem:[%s4 + $0x28] sm:$0xf]
  %v752 = vld [vmem:[%s4 + $0x2c] sm:$0xf]
  %v753 = vld [vmem:[%s4 + $0x30] sm:$0xf]
  %v754 = vld [vmem:[%s4 + $0x34] sm:$0xf]
  %v755 = vld [vmem:[%s4 + $0x38] sm:$0xf]
  %v756 = vld [vmem:[%s4 + $0x3c] sm:$0xf]
  %v757 = vld [vmem:[%s4 + $0x40] sm:$0xf]
  %v758 = vld [vmem:[%s4 + $0x44] sm:$0xf]
  %v759 = vld [vmem:[%s4 + $0x48] sm:$0xf]
  %v760 = vld [vmem:[%s4 + $0x4c] sm:$0xf]
  %v761 = vld [vmem:[%s4 + $0x50] sm:$0xf]
  %v762 = vld [vmem:[%s4 + $0x54] sm:$0xf]
  %v763 = vld [vmem:[%s4 + $0x58] sm:$0xf]
  %v764 = vld [vmem:[%s4 + $0x5c] sm:$0xf]
  %v765 = vld [vmem:[%s4 + $0x60] sm:$0xf]
  %v766 = vld [vmem:[%s4 + $0x64] sm:$0xf]
  %v767 = vld [vmem:[%s4 + $0x68] sm:$0xf]
  %v768 = vld [vmem:[%s4 + $0x6c] sm:$0xf]
  %v769 = vld [vmem:[%s4 + $0x70] sm:$0xf]
  %v770 = vld [vmem:[%s4 + $0x74] sm:$0xf]
  %v771 = vld [vmem:[%s4 + $0x78] sm:$0xf]
  %v772 = vld [vmem:[%s4 + $0x7c] sm:$0xf]
  %v773 = vld [vmem:[%s4 + $0x80] sm:$0xf]
  %v774 = vld [vmem:[%s4 + $0x84] sm:$0xf]
  %v775 = vld [vmem:[%s4 + $0x88] sm:$0xf]
  %v776 = vld [vmem:[%s4 + $0x8c] sm:$0xf]
  %v777 = vld [vmem:[%s4 + $0x90] sm:$0xf]
  %v778 = vld [vmem:[%s4 + $0x94] sm:$0xf]
  %v779 = vld [vmem:[%s4 + $0x98] sm:$0xf]
  %v780 = vld [vmem:[%s4 + $0x9c] sm:$0xf]
  %v781 = vld [vmem:[%s4 + $0xa0] sm:$0xf]
  %v782 = vld [vmem:[%s4 + $0xa4] sm:$0xf]
  %v783 = vld [vmem:[%s4 + $0xa8] sm:$0xf]
  %v784 = vld [vmem:[%s4 + $0xac] sm:$0xf]
  %v785 = vld [vmem:[%s4 + $0xb0] sm:$0xf]
  %v786 = vld [vmem:[%s4 + $0xb4] sm:$0xf]
  %v787 = vld [vmem:[%s4 + $0xb8] sm:$0xf]
  %v788 = vld [vmem:[%s4 + $0xbc] sm:$0xf]
  %v789 = vld [vmem:[%s4 + $0xc0] sm:$0xf]
  %v790 = vld [vmem:[%s4 + $0xc4] sm:$0xf]
  %v791 = vld [vmem:[%s4 + $0xc8] sm:$0xf]
  %v792 = vld [vmem:[%s4 + $0xcc] sm:$0xf]
  %v793 = vld [vmem:[%s4 + $0xd0] sm:$0xf]
  %v794 = vld [vmem:[%s4 + $0xd4] sm:$0xf]
  %v795 = vld [vmem:[%s4 + $0xd8] sm:$0xf]
  %v796 = vld [vmem:[%s4 + $0xdc] sm:$0xf]
  %v797 = vld [vmem:[%s4 + $0xe0] sm:$0xf]
  %v798 = vld [vmem:[%s4 + $0xe4] sm:$0xf]
  %v799 = vld [vmem:[%s4 + $0xe8] sm:$0xf]
  %v800 = vld [vmem:[%s4 + $0xec] sm:$0xf]
  %v801 = vld [vmem:[%s4 + $0xf0] sm:$0xf]
  %v802 = vld [vmem:[%s4 + $0xf4] sm:$0xf]
  %v803 = vld [vmem:[%s4 + $0xf8] sm:$0xf]
  %v804 = vld [vmem:[%s4 + $0xfc] sm:$0xf]
  %v805 = vld [vmem:[%s4 + $0x100] sm:$0xf]
  %v806 = vld [vmem:[%s4 + $0x104] sm:$0xf]
  %v807 = vld [vmem:[%s4 + $0x108] sm:$0xf]
  %v808 = vld [vmem:[%s4 + $0x10c] sm:$0xf]
  %v809 = vld [vmem:[%s4 + $0x110] sm:$0xf]
  %v810 = vld [vmem:[%s4 + $0x114] sm:$0xf]
  %v811 = vld [vmem:[%s4 + $0x118] sm:$0xf]
  %v812 = vld [vmem:[%s4 + $0x11c] sm:$0xf]
  %v813 = vld [vmem:[%s4 + $0x120] sm:$0xf]
  %v814 = vld [vmem:[%s4 + $0x124] sm:$0xf]
  %v815 = vld [vmem:[%s4 + $0x128] sm:$0xf]
  %v816 = vld [vmem:[%s4 + $0x12c] sm:$0xf]
  %v817 = vld [vmem:[%s4 + $0x130] sm:$0xf]
  %v818 = vld [vmem:[%s4 + $0x134] sm:$0xf]
  %v819 = vld [vmem:[%s4 + $0x138] sm:$0xf]
  %v820 = vld [vmem:[%s4 + $0x13c] sm:$0xf]
  %v821 = vld [vmem:[%s4 + $0x140] sm:$0xf]
  %v822 = vld [vmem:[%s4 + $0x144] sm:$0xf]
  %v823 = vld [vmem:[%s4 + $0x148] sm:$0xf]
  %v824 = vld [vmem:[%s4 + $0x14c] sm:$0xf]
  %v825 = vld [vmem:[%s4 + $0x150] sm:$0xf]
  %v826 = vld [vmem:[%s4 + $0x154] sm:$0xf]
  %v827 = vld [vmem:[%s4 + $0x158] sm:$0xf]
  %v828 = vld [vmem:[%s4 + $0x15c] sm:$0xf]
  %v829 = vld [vmem:[%s4 + $0x160] sm:$0xf]
  %v830 = vld [vmem:[%s4 + $0x164] sm:$0xf]
  %v831 = vld [vmem:[%s4 + $0x168] sm:$0xf]
  %v832 = vld [vmem:[%s4 + $0x16c] sm:$0xf]
  %v833 = vld [vmem:[%s4 + $0x170] sm:$0xf]
  %v834 = vld [vmem:[%s4 + $0x174] sm:$0xf]
  %v835 = vld [vmem:[%s4 + $0x178] sm:$0xf]
  %v836 = vld [vmem:[%s4 + $0x17c] sm:$0xf]
  %v837 = vld [vmem:[%s5] sm:$0x1]
  %v839 = vlaneseq
  %v840 = vshrl.u32 %v839, 7
  %v841 = vsub.s32 0, %v840
  %v842 = vrot.slane %v837, %v841
  %v940 = vunpack.c.l.b16 %v741
  %v941 = vunpack.c.l.b16 %v742
  %v942 = vunpack.c.l.b16 %v743
  %v943 = vunpack.c.l.b16 %v744
  %v944 = vunpack.c.l.b16 %v745
  %v945 = vunpack.c.l.b16 %v746
  %v946 = vunpack.c.l.b16 %v747
  %v947 = vunpack.c.l.b16 %v748
  %v948 = vunpack.c.l.b16 %v749
  %v949 = vunpack.c.l.b16 %v750
  %v950 = vunpack.c.l.b16 %v751
  %v951 = vunpack.c.l.b16 %v752
  %v952 = vunpack.c.l.b16 %v753
  %v953 = vunpack.c.l.b16 %v754
  %v954 = vunpack.c.l.b16 %v755
  %v955 = vunpack.c.l.b16 %v756
  %v956 = vunpack.c.l.b16 %v757
  %v957 = vunpack.c.l.b16 %v758
  %v958 = vunpack.c.l.b16 %v759
  %v959 = vunpack.c.l.b16 %v760
  %v960 = vunpack.c.l.b16 %v761
  %v961 = vunpack.c.l.b16 %v762
  %v962 = vunpack.c.l.b16 %v763
  %v963 = vunpack.c.l.b16 %v764
  %v964 = vunpack.c.l.b16 %v765
  %v965 = vunpack.c.l.b16 %v766
  %v966 = vunpack.c.l.b16 %v767
  %v967 = vunpack.c.l.b16 %v768
  %v968 = vunpack.c.l.b16 %v769
  %v969 = vunpack.c.l.b16 %v770
  %v970 = vunpack.c.l.b16 %v771
  %v971 = vunpack.c.l.b16 %v772
  %v972 = vunpack.c.l.b16 %v773
  %v973 = vunpack.c.l.b16 %v774
  %v974 = vunpack.c.l.b16 %v775
  %v975 = vunpack.c.l.b16 %v776
  %v976 = vunpack.c.l.b16 %v777
  %v977 = vunpack.c.l.b16 %v778
  %v978 = vunpack.c.l.b16 %v779
  %v979 = vunpack.c.l.b16 %v780
  %v980 = vunpack.c.l.b16 %v781
  %v981 = vunpack.c.l.b16 %v782
  %v982 = vunpack.c.l.b16 %v783
  %v983 = vunpack.c.l.b16 %v784
  %v984 = vunpack.c.l.b16 %v785
  %v985 = vunpack.c.l.b16 %v786
  %v986 = vunpack.c.l.b16 %v787
  %v987 = vunpack.c.l.b16 %v788
  %v988 = vunpack.c.l.b16 %v789
  %v989 = vunpack.c.l.b16 %v790
  %v990 = vunpack.c.l.b16 %v791
  %v991 = vunpack.c.l.b16 %v792
  %v992 = vunpack.c.l.b16 %v793
  %v993 = vunpack.c.l.b16 %v794
  %v994 = vunpack.c.l.b16 %v795
  %v995 = vunpack.c.l.b16 %v796
  %v996 = vunpack.c.l.b16 %v797
  %v997 = vunpack.c.l.b16 %v798
  %v998 = vunpack.c.l.b16 %v799
  %v999 = vunpack.c.l.b16 %v800
  %v1000 = vunpack.c.l.b16 %v801
  %v1001 = vunpack.c.l.b16 %v802
  %v1002 = vunpack.c.l.b16 %v803
  %v1003 = vunpack.c.l.b16 %v804
  %v1004 = vunpack.c.l.b16 %v805
  %v1005 = vunpack.c.l.b16 %v806
  %v1006 = vunpack.c.l.b16 %v807
  %v1007 = vunpack.c.l.b16 %v808
  %v1008 = vunpack.c.l.b16 %v809
  %v1009 = vunpack.c.l.b16 %v810
  %v1010 = vunpack.c.l.b16 %v811
  %v1011 = vunpack.c.l.b16 %v812
  %v1012 = vunpack.c.l.b16 %v813
  %v1013 = vunpack.c.l.b16 %v814
  %v1014 = vunpack.c.l.b16 %v815
  %v1015 = vunpack.c.l.b16 %v816
  %v1016 = vunpack.c.l.b16 %v817
  %v1017 = vunpack.c.l.b16 %v818
  %v1018 = vunpack.c.l.b16 %v819
  %v1019 = vunpack.c.l.b16 %v820
  %v1020 = vunpack.c.l.b16 %v821
  %v1021 = vunpack.c.l.b16 %v822
  %v1022 = vunpack.c.l.b16 %v823
  %v1023 = vunpack.c.l.b16 %v824
  %v1024 = vunpack.c.l.b16 %v825
  %v1025 = vunpack.c.l.b16 %v826
  %v1026 = vunpack.c.l.b16 %v827
  %v1027 = vunpack.c.l.b16 %v828
  %v1028 = vunpack.c.l.b16 %v829
  %v1029 = vunpack.c.l.b16 %v830
  %v1030 = vunpack.c.l.b16 %v831
  %v1031 = vunpack.c.l.b16 %v832
  %v1032 = vunpack.c.l.b16 %v833
  %v1033 = vunpack.c.l.b16 %v834
  %v1034 = vunpack.c.l.b16 %v835
  %v1035 = vunpack.c.l.b16 %v836
  %v1036 = vpack.c.b16 %v941, %v940
  %v1037 = vpack.c.b16 %v943, %v942
  %v1038 = vpack.c.b16 %v945, %v944
  %v1039 = vpack.c.b16 %v947, %v946
  %v1040 = vpack.c.b16 %v949, %v948
  %v1041 = vpack.c.b16 %v951, %v950
  %v1042 = vpack.c.b16 %v953, %v952
  %v1043 = vpack.c.b16 %v955, %v954
  %v1044 = vpack.c.b16 %v957, %v956
  %v1045 = vpack.c.b16 %v959, %v958
  %v1046 = vpack.c.b16 %v961, %v960
  %v1047 = vpack.c.b16 %v963, %v962
  %v1048 = vpack.c.b16 %v965, %v964
  %v1049 = vpack.c.b16 %v967, %v966
  %v1050 = vpack.c.b16 %v969, %v968
  %v1051 = vpack.c.b16 %v971, %v970
  %v1052 = vpack.c.b16 %v973, %v972
  %v1053 = vpack.c.b16 %v975, %v974
  %v1054 = vpack.c.b16 %v977, %v976
  %v1055 = vpack.c.b16 %v979, %v978
  %v1056 = vpack.c.b16 %v981, %v980
  %v1057 = vpack.c.b16 %v983, %v982
  %v1058 = vpack.c.b16 %v985, %v984
  %v1059 = vpack.c.b16 %v987, %v986
  %v1060 = vpack.c.b16 %v989, %v988
  %v1061 = vpack.c.b16 %v991, %v990
  %v1062 = vpack.c.b16 %v993, %v992
  %v1063 = vpack.c.b16 %v995, %v994
  %v1064 = vpack.c.b16 %v997, %v996
  %v1065 = vpack.c.b16 %v999, %v998
  %v1066 = vpack.c.b16 %v1001, %v1000
  %v1067 = vpack.c.b16 %v1003, %v1002
  %v1068 = vpack.c.b16 %v1005, %v1004
  %v1069 = vpack.c.b16 %v1007, %v1006
  %v1070 = vpack.c.b16 %v1009, %v1008
  %v1071 = vpack.c.b16 %v1011, %v1010
  %v1072 = vpack.c.b16 %v1013, %v1012
  %v1073 = vpack.c.b16 %v1015, %v1014
  %v1074 = vpack.c.b16 %v1017, %v1016
  %v1075 = vpack.c.b16 %v1019, %v1018
  %v1076 = vpack.c.b16 %v1021, %v1020
  %v1077 = vpack.c.b16 %v1023, %v1022
  %v1078 = vpack.c.b16 %v1025, %v1024
  %v1079 = vpack.c.b16 %v1027, %v1026
  %v1080 = vpack.c.b16 %v1029, %v1028
  %v1081 = vpack.c.b16 %v1031, %v1030
  %v1082 = vpack.c.b16 %v1033, %v1032
  %v1083 = vpack.c.b16 %v1035, %v1034
  %1132 = vmatprep.subr.bf16.mxu0 0
  %1133 = vmatpush1.bf16.msra.mxu0 %v1036
  %1134 = vmatprep.subr.bf16.mxu0 0
  %1135 = vmatpush1.bf16.msra.mxu0 %v1037
  %1136 = vmatprep.subr.bf16.mxu0 0
  %1137 = vmatpush1.bf16.msra.mxu0 %v1038
  %1138 = vmatprep.subr.bf16.mxu0 0
  %1139 = vmatpush1.bf16.msra.mxu0 %v1039
  %1140 = vmatprep.subr.bf16.mxu0 0
  %1141 = vmatpush1.bf16.msra.mxu0 %v1040
  %1142 = vmatprep.subr.bf16.mxu0 0
  %1143 = vmatpush1.bf16.msra.mxu0 %v1041
  %1144 = vmatprep.subr.bf16.mxu0 0
  %1145 = vmatpush1.bf16.msra.mxu0 %v1042
  %1146 = vmatprep.subr.bf16.mxu0 0
  %1147 = vmatpush1.bf16.msra.mxu0 %v1043
  %1148 = vmatprep.subr.bf16.mxu0 0
  %1149 = vmatpush1.bf16.msra.mxu0 %v1044
  %1150 = vmatprep.subr.bf16.mxu0 0
  %1151 = vmatpush1.bf16.msra.mxu0 %v1045
  %1152 = vmatprep.subr.bf16.mxu0 0
  %1153 = vmatpush1.bf16.msra.mxu0 %v1046
  %1154 = vmatprep.subr.bf16.mxu0 0
  %1155 = vmatpush1.bf16.msra.mxu0 %v1047
  %1156 = vmatprep.subr.bf16.mxu0 0
  %1157 = vmatpush1.bf16.msra.mxu0 %v1048
  %1158 = vmatprep.subr.bf16.mxu0 0
  %1159 = vmatpush1.bf16.msra.mxu0 %v1049
  %1160 = vmatprep.subr.bf16.mxu0 0
  %1161 = vmatpush1.bf16.msra.mxu0 %v1050
  %1162 = vmatprep.subr.bf16.mxu0 0
  %1163 = vmatpush1.bf16.msra.mxu0 %v1051
  %1164 = vmatprep.mubr.bf16.mxu0 %v58
  %1165 = vmatmul.mubr.bf16.gmra.mrb[0].mxu0 %v57
  %v1166 = vpop.f32.mrb[0].mxu0
  %v1167 = vadd.f32 %v842, %v1166
  %v1168 = vpop.f32.mrb[0].mxu0
  %v1169 = vpop.f32.mrb[0].mxu0
  %v1170 = vpop.f32.mrb[0].mxu0
  %1171 = vdwg.mxu0
  %1172 = vmatprep.subr.bf16.mxu0 0
  %1173 = vmatpush1.bf16.msra.mxu0 %v1052
  %1174 = vmatprep.subr.bf16.mxu0 0
  %1175 = vmatpush1.bf16.msra.mxu0 %v1053
  %1176 = vmatprep.subr.bf16.mxu0 0
  %1177 = vmatpush1.bf16.msra.mxu0 %v1054
  %1178 = vmatprep.subr.bf16.mxu0 0
  %1179 = vmatpush1.bf16.msra.mxu0 %v1055
  %1180 = vmatprep.subr.bf16.mxu0 0
  %1181 = vmatpush1.bf16.msra.mxu0 %v1056
  %1182 = vmatprep.subr.bf16.mxu0 0
  %1183 = vmatpush1.bf16.msra.mxu0 %v1057
  %1184 = vmatprep.subr.bf16.mxu0 0
  %1185 = vmatpush1.bf16.msra.mxu0 %v1058
  %1186 = vmatprep.subr.bf16.mxu0 0
  %1187 = vmatpush1.bf16.msra.mxu0 %v1059
  %1188 = vmatprep.subr.bf16.mxu0 0
  %1189 = vmatpush1.bf16.msra.mxu0 %v1060
  %1190 = vmatprep.subr.bf16.mxu0 0
  %1191 = vmatpush1.bf16.msra.mxu0 %v1061
  %1192 = vmatprep.subr.bf16.mxu0 0
  %1193 = vmatpush1.bf16.msra.mxu0 %v1062
  %1194 = vmatprep.subr.bf16.mxu0 0
  %1195 = vmatpush1.bf16.msra.mxu0 %v1063
  %1196 = vmatprep.subr.bf16.mxu0 0
  %1197 = vmatpush1.bf16.msra.mxu0 %v1064
  %1198 = vmatprep.subr.bf16.mxu0 0
  %1199 = vmatpush1.bf16.msra.mxu0 %v1065
  %1200 = vmatprep.subr.bf16.mxu0 0
  %1201 = vmatpush1.bf16.msra.mxu0 %v1066
  %1202 = vmatprep.subr.bf16.mxu0 0
  %1203 = vmatpush1.bf16.msra.mxu0 %v1067
  %1204 = vmatprep.mubr.bf16.mxu0 %v60
  %1205 = vmatmul.mubr.bf16.gmra.mrb[0].mxu0 %v59
  %v1206 = vpop.f32.mrb[0].mxu0
  %v1207 = vadd.f32 %v1167, %v1206
  %v1208 = vpop.f32.mrb[0].mxu0
  %v1209 = vpop.f32.mrb[0].mxu0
  %v1210 = vpop.f32.mrb[0].mxu0
  %1211 = vdwg.mxu0
  %1212 = vmatprep.subr.bf16.mxu0 0
  %1213 = vmatpush1.bf16.msra.mxu0 %v1068
  %1214 = vmatprep.subr.bf16.mxu0 0
  %1215 = vmatpush1.bf16.msra.mxu0 %v1069
  %1216 = vmatprep.subr.bf16.mxu0 0
  %1217 = vmatpush1.bf16.msra.mxu0 %v1070
  %1218 = vmatprep.subr.bf16.mxu0 0
  %1219 = vmatpush1.bf16.msra.mxu0 %v1071
  %1220 = vmatprep.subr.bf16.mxu0 0
  %1221 = vmatpush1.bf16.msra.mxu0 %v1072
  %1222 = vmatprep.subr.bf16.mxu0 0
  %1223 = vmatpush1.bf16.msra.mxu0 %v1073
  %1224 = vmatprep.subr.bf16.mxu0 0
  %1225 = vmatpush1.bf16.msra.mxu0 %v1074
  %1226 = vmatprep.subr.bf16.mxu0 0
  %1227 = vmatpush1.bf16.msra.mxu0 %v1075
  %1228 = vmatprep.subr.bf16.mxu0 0
  %1229 = vmatpush1.bf16.msra.mxu0 %v1076
  %1230 = vmatprep.subr.bf16.mxu0 0
  %1231 = vmatpush1.bf16.msra.mxu0 %v1077
  %1232 = vmatprep.subr.bf16.mxu0 0
  %1233 = vmatpush1.bf16.msra.mxu0 %v1078
  %1234 = vmatprep.subr.bf16.mxu0 0
  %1235 = vmatpush1.bf16.msra.mxu0 %v1079
  %1236 = vmatprep.subr.bf16.mxu0 0
  %1237 = vmatpush1.bf16.msra.mxu0 %v1080
  %1238 = vmatprep.subr.bf16.mxu0 0
  %1239 = vmatpush1.bf16.msra.mxu0 %v1081
  %1240 = vmatprep.subr.bf16.mxu0 0
  %1241 = vmatpush1.bf16.msra.mxu0 %v1082
  %1242 = vmatprep.subr.bf16.mxu0 0
  %1243 = vmatpush1.bf16.msra.mxu0 %v1083
  %1244 = vmatprep.mubr.bf16.mxu0 %v62
  %1245 = vmatmul.mubr.bf16.gmra.mrb[0].mxu0 %v61
  %v1246 = vpop.f32.mrb[0].mxu0
  %v1247 = vadd.f32 %v1207, %v1246
  %v1248 = vpop.f32.mrb[0].mxu0
  %v1249 = vpop.f32.mrb[0].mxu0
  %v1250 = vpop.f32.mrb[0].mxu0
  %1251 = vdwg.mxu0
  %vm1252 = vcmp.gt.f32.partialorder %v1247, 0.0
  %v1253 = vmul.f32 %v1247, 0.01
  %v1254 = vsel %vm1252, %v1247, %v1253
  %v1255 = vld [vmem:[%s6] sm:$0x1]
  %v1257 = vlaneseq
  %v1258 = vshrl.u32 %v1257, 7
  %v1259 = vsub.s32 0, %v1258
  %v1260 = vrot.slane %v1255, %v1259
  %v1262 = vmul.f32 %v1254, %v1260
  %v1263 = vld [vmem:[%s7] sm:$0x1]
  %v1265 = vlaneseq
  %v1266 = vshrl.u32 %v1265, 7
  %v1267 = vsub.s32 0, %v1266
  %v1268 = vrot.slane %v1263, %v1267
  %v1270 = vmul.f32 %v740, %v1268
  %v1271 = vadd.f32 %v1262, %v1270
  %vm1272 = vcmask 261120
  %v1273 = vsel %vm1272, %v1271, 0.0
  %1274 = vadd.xlane.f32.xlu0 %v1273
  %v1275 = vpop.xlane.xlu0 %1274
  %v1276 = vld [vmem:[#allocation2] sm:$0x1]
  %v1278 = vlaneseq
  %v1279 = vshrl.u32 %v1278, 7
  %v1280 = vsub.s32 0, %v1279
  %v1281 = vrot.slane %v1276, %v1280
  %v1283 = vadd.f32 %v1275, %v1281
  %v1284 = vmul.f32 %v1283, 0.5
  %v1285 = vtanh.pop %v1284
  %v1286 = vmul.f32 %v1285, 0.5
  %v1287 = vsub.f32 0.5, %v1286
  %vm1288 = vcmask 7168
  %1289 = vst.msk [vmem:[%s9] sm:$0xff] %vm1288, %v1287
  %v1290 = vadd.f32 %v1286, 0.5
  %1292 = vrot.lane.b32.xlu0 %v1290, 1
  %v1293 = vpop.permute.xlu0 %1292
  %vm1295 = vcmask 15368
  %1296 = vst.msk [vmem:[%s9] sm:$0xff] %vm1295, %v1293
  // Predicated region
  $region38: #{multimodal_head.1} parent=0 // pred_check
    _
  $region39: #{multimodal_head.1} parent=0 // pred_check_branch
    %1298 = sbr.rel (0) target = $region41
  $region40: #{multimodal_head.1} parent=0 // pred_region
    _
  $region41: #{multimodal_head.1} parent=0 // pred_fallthru
    _
  // Predicated region
  $region42: #{multimodal_head.1} parent=0 // pred_check
    _
  $region43: #{multimodal_head.1} parent=0 // pred_check_branch
    %1300 = sbr.rel (0) target = $region45
  $region44: #{multimodal_head.1} parent=0 // pred_region
    _
  $region45: #{multimodal_head.1} parent=0 // pred_fallthru
    _

</llo_original>
